<compile_context>
chip_gen: v5e
topology: v5e:2x2
jax: 0.10.0
libtpu: 0.0.40
codegen_flags: <defaults>
</compile_context>

<pallas_src>
import jax
import jax.numpy as jnp
from jax.experimental import pallas as pl
from jax.experimental.pallas import tpu as pltpu


def _linear_kernel(w_ref, b_ref, x_ref, o_ref):
    # w_ref / b_ref are shape-(1,) SMEM scalars; scalar load + implicit vreg
    # broadcast over the tile.  Explicit astype keeps the store legal when the
    # promoted compute dtype is wider than the output dtype.
    w = w_ref[0]
    b = b_ref[0]
    o_ref[...] = (x_ref[...] * w + b).astype(o_ref.dtype)


_LANES = 128


def _block_bytes_for_chip():
    """Per-block input-buffer target, sized per TPU generation."""
    try:
        kind = jax.devices()[0].device_kind.lower()
    except Exception:  # pragma: no cover - defensive default
        kind = ""
    if "v7" in kind:
        # v7x: 3.2 TB/s HBM; bigger blocks amortize the ~0.35us/step overhead.
        # 4 x 6 MiB = 24 MiB stays inside the 32-of-64 MiB scoped default.
        return 6 << 20
    if "v5e" in kind or "v5 lite" in kind or "v5lite" in kind:
        # v5e: 16 MiB scoped-VMEM default; 4 x 3 MiB = 12 MiB (limit is also
        # raised explicitly below).
        return 3 << 20
    # v6e and everything else (128 MiB physical VMEM, 32 MiB scoped default).
    return 4 << 20


def _sublane_multiple(dtype):
    # Rows per vreg sublane group: f32 -> 8, bf16/f16 -> 16, int8/fp8 -> 32.
    return {4: 8, 2: 16, 1: 32}.get(jnp.dtype(dtype).itemsize, 8)


def _choose_lane_width(n_elem):
    # Widest 128-multiple that divides numel -> pad-free, lane-dense reshape.
    for w in (8192, 4096, 2048, 1024, 512, 256, 128):
        if n_elem % w == 0:
            return w
    return None  # numel not 128-divisible -> copy-free 1-D fallback path


def _as_smem_scalar(p):
    p = jnp.reshape(jnp.asarray(p), (1,))
    if jnp.dtype(p.dtype).itemsize < 4:
        # SMEM scalar path is 32-bit; upcast narrow params (compute promotes
        # per-element anyway, result is cast back to the output dtype).
        p = p.astype(jnp.float32)
    return p


def linear_model(x, weight, bias):
    """y = x * weight + bias; weight/bias are shape-(1,) params."""
    x = jnp.asarray(x)
    weight = jnp.asarray(weight)
    bias = jnp.asarray(bias)

    orig_shape = x.shape
    n_elem = x.size
    out_dtype = jnp.result_type(x.dtype, weight.dtype, bias.dtype)
    in_isz = jnp.dtype(x.dtype).itemsize
    out_isz = jnp.dtype(out_dtype).itemsize
    bpe = max(in_isz, out_isz)
    sub = max(_sublane_multiple(x.dtype), _sublane_multiple(out_dtype))

    w_smem = _as_smem_scalar(weight)
    b_smem = _as_smem_scalar(bias)

    block_bytes = _block_bytes_for_chip()
    # Cover 2 arrays x 2 pipeline buffers x block, plus headroom.
    compiler_params = pltpu.CompilerParams(
        # TODO(synk): on v7x, verify in xprof that this axis core-shards across
        # both TensorCores; if not, switch it to pltpu.CORE_PARALLEL (cannot be
        # verified without a v7x trace here).
        dimension_semantics=("parallel",),
        vmem_limit_bytes=4 * block_bytes + (8 << 20),
    )
    cost = pl.CostEstimate(
        flops=2 * n_elem,
        transcendentals=0,
        bytes_accessed=n_elem * (in_isz + out_isz) + 8,
    )
    smem_spec = pl.BlockSpec(memory_space=pltpu.MemorySpace.SMEM)

    width = _choose_lane_width(n_elem)

    if width is not None:
        # ---- main path: lane-dense 2-D slab, pad-free reshape (bitcast) ----
        rows = n_elem // width
        x2d = jnp.reshape(x, (rows, width))

        tile_r = max(sub, (block_bytes // (width * bpe)) // sub * sub)
        if tile_r >= rows:
            tile_r, grid_r = rows, 1  # block == full array dims: always legal
        else:
            grid_r = pl.cdiv(rows, tile_r)
            if grid_r % 2:
                # Prefer an even block count so a 2-TC chip gets balanced halves.
                t2 = ((pl.cdiv(rows, grid_r + 1) + sub - 1) // sub) * sub
                g2 = pl.cdiv(rows, max(t2, sub))
                if t2 >= sub and g2 % 2 == 0:
                    tile_r, grid_r = t2, g2

        out2d = pl.pallas_call(
            _linear_kernel,
            out_shape=jax.ShapeDtypeStruct((rows, width), out_dtype),
            grid_spec=pltpu.PrefetchScalarGridSpec(
                num_scalar_prefetch=0,
                grid=(grid_r,),
                in_specs=[
                    smem_spec,                                         # weight
                    smem_spec,                                         # bias
                    pl.BlockSpec((tile_r, width), lambda i: (i, 0)),   # x tile
                ],
                out_specs=pl.BlockSpec((tile_r, width), lambda i: (i, 0)),
            ),
            compiler_params=compiler_params,
            cost_estimate=cost,
        )(w_smem, b_smem, x2d)
        return jnp.reshape(out2d, orig_shape)

    # ---- fallback: numel % 128 != 0 -> copy-free 1-D blocks ----
    # No pad/concatenate and no output slice: the flat array goes straight in.
    x1d = jnp.reshape(x, (n_elem,))
    tile_n = max(_LANES, (block_bytes // bpe) // _LANES * _LANES)
    if tile_n >= n_elem:
        tile_n, grid_n = n_elem, 1  # single full-array block, no masking
    else:
        grid_n = pl.cdiv(n_elem, tile_n)  # ragged last block masked by Pallas

    out1d = pl.pallas_call(
        _linear_kernel,
        out_shape=jax.ShapeDtypeStruct((n_elem,), out_dtype),
        grid_spec=pltpu.PrefetchScalarGridSpec(
            num_scalar_prefetch=0,
            grid=(grid_n,),
            in_specs=[
                smem_spec,                                   # weight
                smem_spec,                                   # bias
                pl.BlockSpec((tile_n,), lambda i: (i,)),     # x chunk
            ],
            out_specs=pl.BlockSpec((tile_n,), lambda i: (i,)),
        ),
        compiler_params=compiler_params,
        cost_estimate=cost,
    )(w_smem, b_smem, x1d)
    return jnp.reshape(out1d, orig_shape)


if __name__ == "__main__":
    key = jax.random.PRNGKey(0)
    kx, kw, kb = jax.random.split(key, 3)

    # small NCHW-like input consistent with the module's forward
    x = jax.random.normal(kx, (2, 4, 16, 16), dtype=jnp.float32)

    # deterministic "randn(1)" parameters
    weight = jax.random.normal(kw, (1,), dtype=jnp.float32)
    bias = jax.random.normal(kb, (1,), dtype=jnp.float32)

    y = jax.block_until_ready(linear_model(x, weight, bias))
    y_ref = x * weight + bias
    assert y.shape == x.shape
    assert jnp.allclose(y, y_ref, atol=1e-6), "mismatch vs reference (small)"

    # larger input exercising the multi-block pipelined 2-D path
    # (numel = 2,129,920 -> width 8192, rows 260, several row tiles with a
    #  masked ragged tail block)
    kx2, kx3 = jax.random.split(kx)
    x_big = jax.random.normal(kx2, (8, 16, 128, 130), dtype=jnp.float32)
    y_big = jax.block_until_ready(linear_model(x_big, weight, bias))
    y_big_ref = x_big * weight + bias
    assert y_big.shape == x_big.shape
    assert jnp.allclose(y_big, y_big_ref, atol=1e-6), "mismatch vs reference (tiled)"

    # copy-free fallback path: numel % 128 != 0 (1155 elems -> single 1-D block)
    x_odd = jax.random.normal(kx3, (3, 5, 7, 11), dtype=jnp.float32)
    y_odd = jax.block_until_ready(linear_model(x_odd, weight, bias))
    y_odd_ref = x_odd * weight + bias
    assert y_odd.shape == x_odd.shape
    assert jnp.allclose(y_odd, y_odd_ref, atol=1e-6), "mismatch vs reference (odd)"

    print("KERNEL_OK")
</pallas_src>

<mosaic_0001>
module attributes {stable_mosaic.version = 11 : i64} {
  func.func @_linear_kernel(%arg0: i32, %arg1: memref<1xf32, #tpu.memory_space<smem>>, %arg2: memref<1xf32, #tpu.memory_space<smem>>, %arg3: memref<1x2048xf32, #tpu.memory_space<vmem>>, %arg4: memref<1x2048xf32, #tpu.memory_space<vmem>>) attributes {dimension_semantics = [#tpu.dimension_semantics<parallel>], iteration_bounds = array<i64: 1>, scalar_prefetch = 0 : i64, scratch_operands = 0 : i64, tpu.core_type = #tpu.core_type<tc>, window_params = [{transform_indices = @transform_0, window_bounds = array<i64: 1>}, {transform_indices = @transform_1, window_bounds = array<i64: 1>}, {transform_indices = @transform_2, window_bounds = array<i64: 1, 2048>}, {transform_indices = @transform_3, window_bounds = array<i64: 1, 2048>}]} {
    %c0 = arith.constant 0 : index
    %0 = memref.load %arg1[%c0] : memref<1xf32, #tpu.memory_space<smem>>
    %c0_0 = arith.constant 0 : index
    %1 = memref.load %arg2[%c0_0] : memref<1xf32, #tpu.memory_space<smem>>
    %c0_1 = arith.constant 0 : index
    %c0_2 = arith.constant 0 : index
    %2 = vector.load %arg3[%c0_1, %c0_2] : memref<1x2048xf32, #tpu.memory_space<vmem>>, vector<1x2048xf32>
    %3 = vector.broadcast %0 : f32 to vector<1x2048xf32>
    %4 = arith.mulf %2, %3 : vector<1x2048xf32>
    %5 = vector.broadcast %1 : f32 to vector<1x2048xf32>
    %6 = arith.addf %4, %5 : vector<1x2048xf32>
    %c0_3 = arith.constant 0 : index
    %c0_4 = arith.constant 0 : index
    %7 = vector.load %arg4[%c0_3, %c0_4] : memref<1x2048xf32, #tpu.memory_space<vmem>>, vector<1x2048xf32>
    tpu.vector_store %arg4[%c0_3, %c0_4], %6 {strides = array<i32>} : memref<1x2048xf32, #tpu.memory_space<vmem>>, vector<1x2048xf32>,
    return
  }
  func.func @transform_0(%arg0: i32) -> i32 {
    %c0_i32 = arith.constant 0 : i32
    %c0_i32_0 = arith.constant 0 : i32
    return %c0_i32 : i32
  }
  func.func @transform_1(%arg0: i32) -> i32 {
    %c0_i32 = arith.constant 0 : i32
    %c0_i32_0 = arith.constant 0 : i32
    return %c0_i32 : i32
  }
  func.func @transform_2(%arg0: i32) -> (i32, i32) {
    %c0_i32 = arith.constant 0 : i32
    %c0_i32_0 = arith.constant 0 : i32
    return %arg0, %c0_i32 : i32, i32
  }
  func.func @transform_3(%arg0: i32) -> (i32, i32) {
    %c0_i32 = arith.constant 0 : i32
    %c0_i32_0 = arith.constant 0 : i32
    return %arg0, %c0_i32 : i32, i32
  }
}

</mosaic_0001>

<llo_original>
// kernel: tpu_custom_call.1
$region0: #{tpu_custom_call.1}
  #allocation0 [shape = 'u32[]', space=smem, size = 0x4, offset = 0x4, fixed_abs, tag = 'smem constant byte address 0x4 - core index']
  #allocation1 [shape = 'u32[72,128]{1,0:T(1,128)}', space=vmem, size = 0x9000, scoped, tag = 'internal scratch']
  #allocation2 [shape = 'f32[1]{0:T(128)S(6)}', space=smem, size = 0x200, scoped, tag = 'scoped memory for tpu_custom_call.1']
  #allocation3 [shape = 'f32[1]{0:T(128)S(6)}', space=smem, size = 0x200, scoped, tag = 'scoped memory for tpu_custom_call.1']
  %s0 = inlined_call_operand.<no memory space> [shape: f32[1], index: 0, kind: input, shape index: {}]
  %s1 = inlined_call_operand.<no memory space> [shape: f32[1], index: 1, kind: input, shape index: {}]
  %s2 = inlined_call_operand.hbm [shape: f32[1,2048], index: 2, kind: input, shape index: {}]
  %s3 = inlined_call_operand.hbm [shape: f32[1,2048], index: 3, kind: output, shape index: {}]
  %s4 = sld [smem:[#allocation0]]
  $region26: #{tpu_custom_call.1} parent=0
    _
  %s6 = ssub.s32 1, %s4
  %s7 = scalar_select 0, %s6, %s4
  %8 = sst [smem:[#allocation2]] %s0
  %9 = sst [smem:[#allocation3]] %s1
  $region1: #{tpu_custom_call.1} parent=0
    #allocation4 [shape = 'u8[8192]{0}', space=vmem, size = 0x2000, scoped, tag = 'input window, operand 2, single buffered']
    #allocation5 [shape = 's32[1]{0}', space=sflag, size = 0x4, scoped, tag = 'scoped memory for tpu_custom_call.1']
    #allocation6 [shape = 's32[1]{0}', space=sflag, size = 0x4, scoped, tag = 'scoped memory for tpu_custom_call.1']
    #allocation7 [shape = 'u8[8192]{0}', space=vmem, size = 0x2000, scoped, tag = 'output window, operand 0, single buffered']
    %10 = vsyncpa [#allocation5], 0
    %11 = vsyncpa [#allocation6], 0
    // Predicated region
    $region2: #{tpu_custom_call.1} parent=1 // pred_check
      _
    $region3: #{tpu_custom_call.1} parent=1 // pred_check_branch
      %13 = sbr.rel (0) target = $region5
    $region4: #{tpu_custom_call.1} parent=1 // pred_region
      _
    $region5: #{tpu_custom_call.1} parent=1 // pred_fallthru
      _
    // Predicated region
    $region6: #{tpu_custom_call.1} parent=1 // pred_check
      _
    $region7: #{tpu_custom_call.1} parent=1 // pred_check_branch
      %15 = sbr.rel (0) target = $region9
    $region8: #{tpu_custom_call.1} parent=1 // pred_region
      _
    $region9: #{tpu_custom_call.1} parent=1 // pred_fallthru
      _
    // Predicated region
    $region10: #{tpu_custom_call.1} parent=1 // pred_check
      _
    $region11: #{tpu_custom_call.1} parent=1 // pred_check_branch
      %17 = sbr.rel (0) target = $region13
    $region12: #{tpu_custom_call.1} parent=1 // pred_region
      %19 = vsyncadd [#allocation5], 0
      %s21 = sshll.u32 %s2, 4
      %s22 = int_to_ptr.hbm [resolvable:$true] %s21
      %s23 = sshll.u32 [#allocation4], 4
      %s24 = int_to_ptr.vmem [resolvable:$true] %s23
      %26 = dma.hbm_to_vmem [thread:$0]  %s22, 256, %s24, [#allocation5]
    $region13: #{tpu_custom_call.1} parent=1 // pred_fallthru
      _
    // Predicated region
    $region14: #{tpu_custom_call.1} parent=1 // pred_check
      _
    $region15: #{tpu_custom_call.1} parent=1 // pred_check_branch
      %28 = sbr.rel (0) target = $region17
    $region16: #{tpu_custom_call.1} parent=1 // pred_region
      %30 = dma.done [#allocation5], 256
    $region17: #{tpu_custom_call.1} parent=1 // pred_fallthru
      _
    %s31 = sld [smem:[#allocation2]]
    %s32 = sld [smem:[#allocation3]]
    %v33 = vld [vmem:[#allocation4] sm:$0xff]
    %v34 = vld [vmem:[#allocation4 + $0x8] sm:$0xff]
    %v35 = vstv %s31
    %v36 = vmul.f32 %v33, %v35
    %v37 = vmul.f32 %v34, %v35
    %v38 = vstv %s32
    %v39 = vadd.f32 %v36, %v38
    %v40 = vadd.f32 %v37, %v38
    %41 = vst [vmem:[#allocation7] sm:$0xff] %v39
    %42 = vst [vmem:[#allocation7 + $0x8] sm:$0xff] %v40
    // Predicated region
    $region18: #{tpu_custom_call.1} parent=1 // pred_check
      _
    $region19: #{tpu_custom_call.1} parent=1 // pred_check_branch
      %44 = sbr.rel (0) target = $region21
    $region20: #{tpu_custom_call.1} parent=1 // pred_region
      %46 = vsyncadd [#allocation6], 0
      %s48 = sshll.u32 [#allocation7], 4
      %s49 = int_to_ptr.vmem [resolvable:$true] %s48
      %s50 = sshll.u32 %s3, 4
      %s51 = int_to_ptr.hbm [resolvable:$true] %s50
      %53 = dma.vmem_to_hbm [thread:$0]  %s49, 256, %s51, [#allocation6]
    $region21: #{tpu_custom_call.1} parent=1 // pred_fallthru
      _
    // Predicated region
    $region22: #{tpu_custom_call.1} parent=1 // pred_check
      _
    $region23: #{tpu_custom_call.1} parent=1 // pred_check_branch
      %55 = sbr.rel (0) target = $region25
    $region24: #{tpu_custom_call.1} parent=1 // pred_region
      %57 = dma.done [#allocation6], 256
    $region25: #{tpu_custom_call.1} parent=1 // pred_fallthru
      _
    %58 = vsyncpa [#allocation5], 1
    %59 = vsyncpa [#allocation6], 1

</llo_original>
